<compile_context>
chip_gen: v6e
topology: v6e:2x2x1
jax: 0.10.0
libtpu: 0.0.40
codegen_flags: <defaults>
</compile_context>

<pallas_src>
import functools

import jax
import jax.numpy as jnp
from jax.experimental import pallas as pl
from jax.experimental.pallas import tpu as pltpu

_LANES = 128
_SUBLANES = 8
# Per-input, per-pipeline-buffer block budget: 4 MiB blocks -> 2 inputs x 2
# buffers = 16 MiB of streamed VMEM (fits v7x's 64 MiB physical VMEM easily).
_MAX_BLOCK_BYTES = 4 * 1024 * 1024
_VMEM_LIMIT_BYTES = 32 * 1024 * 1024
# Below this, a fused XLA reduction beats the fixed pallas_call launch cost.
_MIN_PALLAS_ELEMS = 512 * 1024


def _row_granule(*dtypes):
    """Row-block granularity respecting native sublane packing."""
    bits = 8 * min(jnp.dtype(d).itemsize for d in dtypes)
    return _SUBLANES * max(1, 32 // bits)  # f32 -> 8, bf16 -> 16, int8 -> 32


def _simse_sum_kernel(pred_ref, real_ref, out_ref, acc_ref, *,
                      steps, num_blocks, valid_last_rows, has_overhang):
    """Accumulate sum(real - pred) into a per-core (8, 128) partial."""
    p = pl.program_id(0)   # parallel slice (one per TensorCore on v7x)
    i = pl.program_id(1)   # reduction step within the slice

    @pl.when(i == 0)
    def _():
        acc_ref[...] = jnp.zeros_like(acc_ref)

    # Native-dtype loads; cast on the VPU (portable across v5e/v6e/v7x).
    diff = real_ref[...].astype(jnp.float32) - pred_ref[...].astype(jnp.float32)
    groups = diff.shape[0] // _SUBLANES
    gb = p * steps + i          # global row-block index
    last = num_blocks - 1

    def _accumulate(d):
        # Per-step partial reduce into one vreg: pure VPU adds; only a single
        # acc read-modify-write per step (vst is the scarcest slot).
        acc_ref[...] += jnp.sum(d.reshape(groups, _SUBLANES, _LANES), axis=0)

    if valid_last_rows is not None:
        # Ragged last block: the iota/compare/select runs ONLY for that block;
        # overhang duplicates (gb > last, from clamping) are skipped entirely.
        @pl.when(gb < last)
        def _():
            _accumulate(diff)

        @pl.when(gb == last)
        def _():
            row_ids = jax.lax.broadcasted_iota(jnp.int32, diff.shape, 0)
            _accumulate(jnp.where(row_ids < valid_last_rows, diff, 0.0))
    elif has_overhang:
        # num_blocks not divisible by the parallel split: skip the clamped
        # duplicate block(s) at the end of the last slice.
        @pl.when(gb <= last)
        def _():
            _accumulate(diff)
    else:
        _accumulate(diff)

    @pl.when(i == steps - 1)
    def _():
        out_ref[0] = acc_ref[...]   # lane-dense (8, 128) partial per slice


def simse(pred, real, *, max_block_bytes=_MAX_BLOCK_BYTES,
          min_pallas_elems=_MIN_PALLAS_ELEMS, num_parallel=2):
    """Pallas TPU implementation of SIMSE.forward(pred, real)."""
    assert pred.shape == real.shape, "pred/real must have the same shape"
    n = pred.size
    n_f32 = jnp.float32(n)

    def _xla_fallback():
        d = real.astype(jnp.float32) - pred.astype(jnp.float32)
        return (jnp.sum(d) / n_f32) ** 2

    granule = _row_granule(pred.dtype, real.dtype)
    rows, lane_rem = divmod(n, _LANES)

    # The kernel path requires a copy-free lane-dense (rows, 128) view.  When
    # n % 128 != 0, building it would need a slice/pad of the whole tensor in
    # HBM (an extra full read+write pass) -- for a mem-bound reduction that
    # costs more than the kernel saves, so use the fused XLA reduce instead.
    if n < min_pallas_elems or lane_rem != 0 or rows < granule:
        return _xla_fallback()

    pred_2d = jnp.ravel(pred).reshape(rows, _LANES)   # free, row-major view
    real_2d = jnp.ravel(real).reshape(rows, _LANES)

    itemsize = max(jnp.dtype(pred.dtype).itemsize,
                   jnp.dtype(real.dtype).itemsize)
    budget_rows = max(granule, max_block_bytes // (_LANES * itemsize))
    block_rows = (min(budget_rows, rows) // granule) * granule
    num_blocks = pl.cdiv(rows, block_rows)

    # Leading "parallel" axis shards the row range across TensorCores on v7x
    # (2 TC/chip); measured-neutral on v5e/v6e (1 TC/chip).
    p_dim = num_parallel if num_blocks >= num_parallel else 1
    steps = pl.cdiv(num_blocks, p_dim)
    has_overhang = p_dim * steps != num_blocks

    tail_rows = rows - (num_blocks - 1) * block_rows
    valid_last_rows = tail_rows if tail_rows != block_rows else None

    kernel = functools.partial(
        _simse_sum_kernel,
        steps=steps, num_blocks=num_blocks,
        valid_last_rows=valid_last_rows, has_overhang=has_overhang)

    def in_map(p, i):
        # Clamp so overhang steps re-fetch the last block (skipped in-kernel).
        return (jnp.minimum(p * steps + i, num_blocks - 1), 0)

    partials = pl.pallas_call(
        kernel,
        out_shape=jax.ShapeDtypeStruct((p_dim, _SUBLANES, _LANES), jnp.float32),
        grid_spec=pltpu.PrefetchScalarGridSpec(
            num_scalar_prefetch=0,
            grid=(p_dim, steps),
            in_specs=[
                pl.BlockSpec((block_rows, _LANES), in_map),
                pl.BlockSpec((block_rows, _LANES), in_map),
            ],
            out_specs=pl.BlockSpec((1, _SUBLANES, _LANES),
                                   lambda p, i: (p, 0, 0)),
            scratch_shapes=[pltpu.VMEM((_SUBLANES, _LANES), jnp.float32)],
        ),
        compiler_params=pltpu.CompilerParams(
            dimension_semantics=("parallel", "arbitrary"),
            vmem_limit_bytes=_VMEM_LIMIT_BYTES,
        ),
    )(pred_2d, real_2d)

    total = jnp.sum(partials)      # P * 8 * 128 f32 values -> trivial XLA op
    # (s / n)^2 is more robust than s^2 / n^2 in f32 for very large n.
    return (total / n_f32) ** 2


if __name__ == "__main__":
    key = jax.random.PRNGKey(0)
    k1, k2, k3, k4, k5, k6, k7, k8 = jax.random.split(key, 8)

    def ref_simse(pred, real):
        d = real.astype(jnp.float32) - pred.astype(jnp.float32)
        return (jnp.sum(d) ** 2) / jnp.float32(d.size) ** 2

    # 1) NCHW f32: single-block kernel path.
    shape1 = (2, 4, 16, 16)
    pred1 = jax.random.normal(k1, shape1, dtype=jnp.float32)
    real1 = jax.random.normal(k2, shape1, dtype=jnp.float32)
    out1 = jax.block_until_ready(simse(pred1, real1, min_pallas_elems=0))
    assert jnp.allclose(out1, ref_simse(pred1, real1), rtol=1e-3, atol=1e-6)

    # 2) bf16: multi-step reduction + ragged last row-block + parallel split
    #    (small block override so the tiny demo exercises those paths).
    shape2 = (2, 3, 20, 64)          # 7680 elems = 60 rows of 128
    pred2 = jax.random.normal(k3, shape2, dtype=jnp.bfloat16)
    real2 = jax.random.normal(k4, shape2, dtype=jnp.bfloat16)
    out2 = jax.block_until_ready(
        simse(pred2, real2, min_pallas_elems=0, max_block_bytes=4096))
    assert jnp.allclose(out2, ref_simse(pred2, real2), rtol=2e-3, atol=1e-6)

    # 3) f32 with an odd number of row-blocks: exercises the clamped-overhang
    #    skip on the parallel axis plus a ragged last block.
    shape3 = (5, 8, 128)             # 5120 elems = 40 rows of 128
    pred3 = jax.random.normal(k5, shape3, dtype=jnp.float32)
    real3 = jax.random.normal(k6, shape3, dtype=jnp.float32)
    out3 = jax.block_until_ready(
        simse(pred3, real3, min_pallas_elems=0, max_block_bytes=8192))
    assert jnp.allclose(out3, ref_simse(pred3, real3), rtol=1e-3, atol=1e-6)

    # 4) n % 128 != 0: copy-free lane-dense view impossible -> XLA fallback.
    shape4 = (3, 5, 17, 13)
    pred4 = jax.random.normal(k7, shape4, dtype=jnp.float32)
    real4 = jax.random.normal(k8, shape4, dtype=jnp.float32)
    out4 = jax.block_until_ready(simse(pred4, real4, min_pallas_elems=0))
    assert jnp.allclose(out4, ref_simse(pred4, real4), rtol=1e-3, atol=1e-6)

    print("KERNEL_OK")
</pallas_src>

<mosaic_0001>
module attributes {stable_mosaic.version = 11 : i64} {
  func.func @_simse_sum_kernel(%arg0: i32, %arg1: i32, %arg2: memref<16x128xf32, #tpu.memory_space<vmem>>, %arg3: memref<16x128xf32, #tpu.memory_space<vmem>>, %arg4: memref<1x8x128xf32, #tpu.memory_space<vmem>>, %arg5: memref<8x128xf32, #tpu.memory_space<vmem>>) attributes {dimension_semantics = [#tpu.dimension_semantics<parallel>, #tpu.dimension_semantics<arbitrary>], iteration_bounds = array<i64: 1, 1>, scalar_prefetch = 0 : i64, scratch_operands = 1 : i64, tpu.core_type = #tpu.core_type<tc>, window_params = [{transform_indices = @transform_0, window_bounds = array<i64: 16, 128>}, {transform_indices = @transform_1, window_bounds = array<i64: 16, 128>}, {transform_indices = @transform_2, window_bounds = array<i64: 1, 8, 128>}]} {
    %c0_i32 = arith.constant 0 : i32
    %0 = arith.cmpi eq, %arg1, %c0_i32 : i32
    %1 = arith.extui %0 : i1 to i32
    %c0_i32_0 = arith.constant 0 : i32
    %2 = arith.cmpi ne, %1, %c0_i32_0 : i32
    scf.if %2 {
      %cst_10 = arith.constant 0.000000e+00 : f32
      %14 = vector.broadcast %cst_10 : f32 to vector<8x128xf32>
      %c0_11 = arith.constant 0 : index
      %c0_12 = arith.constant 0 : index
      %15 = vector.load %arg5[%c0_11, %c0_12] : memref<8x128xf32, #tpu.memory_space<vmem>>, vector<8x128xf32>
      tpu.vector_store %arg5[%c0_11, %c0_12], %14 {strides = array<i32>} : memref<8x128xf32, #tpu.memory_space<vmem>>, vector<8x128xf32>,
    } else {
    }
    %c0 = arith.constant 0 : index
    %c0_1 = arith.constant 0 : index
    %3 = vector.load %arg3[%c0, %c0_1] : memref<16x128xf32, #tpu.memory_space<vmem>>, vector<16x128xf32>
    %c0_2 = arith.constant 0 : index
    %c0_3 = arith.constant 0 : index
    %4 = vector.load %arg2[%c0_2, %c0_3] : memref<16x128xf32, #tpu.memory_space<vmem>>, vector<16x128xf32>
    %5 = arith.subf %3, %4 : vector<16x128xf32>
    %c0_4 = arith.constant 0 : index
    %c0_5 = arith.constant 0 : index
    %6 = vector.load %arg5[%c0_4, %c0_5] : memref<8x128xf32, #tpu.memory_space<vmem>>, vector<8x128xf32>
    %7 = vector.shape_cast %5 : vector<16x128xf32> to vector<2x8x128xf32>
    %cst = arith.constant dense<0.000000e+00> : vector<8x128xf32>
    %8 = vector.multi_reduction <add>, %7, %cst [0] : vector<2x8x128xf32> to vector<8x128xf32>
    %9 = arith.addf %6, %8 : vector<8x128xf32>
    %c0_6 = arith.constant 0 : index
    %c0_7 = arith.constant 0 : index
    %10 = vector.load %arg5[%c0_6, %c0_7] : memref<8x128xf32, #tpu.memory_space<vmem>>, vector<8x128xf32>
    tpu.vector_store %arg5[%c0_6, %c0_7], %9 {strides = array<i32>} : memref<8x128xf32, #tpu.memory_space<vmem>>, vector<8x128xf32>,
    %c0_i32_8 = arith.constant 0 : i32
    %11 = arith.cmpi eq, %arg1, %c0_i32_8 : i32
    %12 = arith.extui %11 : i1 to i32
    %c0_i32_9 = arith.constant 0 : i32
    %13 = arith.cmpi ne, %12, %c0_i32_9 : i32
    scf.if %13 {
      %c0_10 = arith.constant 0 : index
      %c0_11 = arith.constant 0 : index
      %14 = vector.load %arg5[%c0_10, %c0_11] : memref<8x128xf32, #tpu.memory_space<vmem>>, vector<8x128xf32>
      %c0_12 = arith.constant 0 : index
      %c0_13 = arith.constant 0 : index
      %c0_14 = arith.constant 0 : index
      %15 = vector.load %arg4[%c0_12, %c0_13, %c0_14] : memref<1x8x128xf32, #tpu.memory_space<vmem>>, vector<1x8x128xf32>
      %16 = vector.shape_cast %15 : vector<1x8x128xf32> to vector<8x128xf32>
      %17 = vector.shape_cast %14 : vector<8x128xf32> to vector<1x8x128xf32>
      tpu.vector_store %arg4[%c0_12, %c0_13, %c0_14], %17 {strides = array<i32>} : memref<1x8x128xf32, #tpu.memory_space<vmem>>, vector<1x8x128xf32>,
    } else {
    }
    return
  }
  func.func @transform_0(%arg0: i32, %arg1: i32) -> (i32, i32) {
    %c1_i32 = arith.constant 1 : i32
    %0 = arith.muli %arg0, %c1_i32 : i32
    %1 = arith.addi %0, %arg1 : i32
    %c0_i32 = arith.constant 0 : i32
    %2 = arith.minsi %1, %c0_i32 : i32
    %c0_i32_0 = arith.constant 0 : i32
    %c0_i32_1 = arith.constant 0 : i32
    return %2, %c0_i32_0 : i32, i32
  }
  func.func @transform_1(%arg0: i32, %arg1: i32) -> (i32, i32) {
    %c1_i32 = arith.constant 1 : i32
    %0 = arith.muli %arg0, %c1_i32 : i32
    %1 = arith.addi %0, %arg1 : i32
    %c0_i32 = arith.constant 0 : i32
    %2 = arith.minsi %1, %c0_i32 : i32
    %c0_i32_0 = arith.constant 0 : i32
    %c0_i32_1 = arith.constant 0 : i32
    return %2, %c0_i32_0 : i32, i32
  }
  func.func @transform_2(%arg0: i32, %arg1: i32) -> (i32, i32, i32) {
    %c0_i32 = arith.constant 0 : i32
    %c0_i32_0 = arith.constant 0 : i32
    %c0_i32_1 = arith.constant 0 : i32
    return %arg0, %c0_i32, %c0_i32_0 : i32, i32, i32
  }
}

</mosaic_0001>

<llo_original>
// kernel: tpu_custom_call.1
$region0: #{tpu_custom_call.1}
  #allocation0 [shape = 'u32[]', space=smem, size = 0x4, offset = 0x4, fixed_abs, tag = 'smem constant byte address 0x4 - core index']
  #allocation1 [shape = 'u32[144,128]{1,0:T(1,128)}', space=vmem, size = 0x12000, scoped, tag = 'internal scratch']
  #allocation2 [shape = 'f32[8,128]{1,0:T(8,128)}', space=vmem, size = 0x1000, scoped, tag = 'scratch operand']
  %s0 = inlined_call_operand.hbm [shape: f32[16,128], index: 0, kind: input, shape index: {}]
  %s1 = inlined_call_operand.hbm [shape: f32[16,128], index: 1, kind: input, shape index: {}]
  %s2 = inlined_call_operand.hbm [shape: f32[1,8,128], index: 2, kind: output, shape index: {}]
  %s3 = sld [smem:[#allocation0]]
  $region34: #{tpu_custom_call.1} parent=0
    _
  %s5 = ssub.s32 1, %s3
  %s6 = scalar_select 0, %s5, %s3
  $region1: #{tpu_custom_call.1} parent=0
    #allocation3 [shape = 'u8[8192]{0}', space=vmem, size = 0x2000, scoped, tag = 'input window, operand 0, single buffered']
    #allocation4 [shape = 's32[1]{0}', space=sflag, size = 0x4, scoped, tag = 'scoped memory for tpu_custom_call.1']
    #allocation5 [shape = 's32[1]{0}', space=sflag, size = 0x4, scoped, tag = 'scoped memory for tpu_custom_call.1']
    #allocation6 [shape = 'u8[8192]{0}', space=vmem, size = 0x2000, scoped, tag = 'input window, operand 1, single buffered']
    #allocation7 [shape = 's32[1]{0}', space=sflag, size = 0x4, scoped, tag = 'scoped memory for tpu_custom_call.1']
    #allocation8 [shape = 'u8[4096]{0}', space=vmem, size = 0x1000, scoped, tag = 'output window, operand 0, single buffered']
    %7 = vsyncpa [#allocation4], 0
    %8 = vsyncpa [#allocation7], 0
    %9 = vsyncpa [#allocation5], 0
    // Predicated region
    $region2: #{tpu_custom_call.1} parent=1 // pred_check
      _
    $region3: #{tpu_custom_call.1} parent=1 // pred_check_branch
      %11 = sbr.rel (0) target = $region5
    $region4: #{tpu_custom_call.1} parent=1 // pred_region
      %s12 = sadd.s32 0, 0
      %p13 = scmp.lt.s32.totalorder %s12, 0
      %s14 = scalar_select %p13, %s12, 0
      %s15 = smul.u32 2, %s14
      %s17 = ssub.s32 256, 256
      %18 = vsyncadd [#allocation4], %s17
      %s19 = smul.addr %s15, 128
      %s20 = scalar_lea.hbm %s0, %s19
      %s21 = sshll.u32 [#allocation3], 4
      %s22 = int_to_ptr.vmem [resolvable:$true] %s21
      %27 = dma.hbm_to_vmem [thread:$0]  %s20, 256, %s22, [#allocation4], 128, 128, 8
    $region5: #{tpu_custom_call.1} parent=1 // pred_fallthru
      _
    // Predicated region
    $region6: #{tpu_custom_call.1} parent=1 // pred_check
      _
    $region7: #{tpu_custom_call.1} parent=1 // pred_check_branch
      %29 = sbr.rel (0) target = $region9
    $region8: #{tpu_custom_call.1} parent=1 // pred_region
      %s30 = sadd.s32 0, 0
      %p31 = scmp.lt.s32.totalorder %s30, 0
      %s32 = scalar_select %p31, %s30, 0
      %s33 = smul.u32 2, %s32
      %s35 = ssub.s32 256, 256
      %36 = vsyncadd [#allocation7], %s35
      %s37 = smul.addr %s33, 128
      %s38 = scalar_lea.hbm %s1, %s37
      %s39 = sshll.u32 [#allocation6], 4
      %s40 = int_to_ptr.vmem [resolvable:$true] %s39
      %45 = dma.hbm_to_vmem [thread:$0]  %s38, 256, %s40, [#allocation7], 128, 128, 8
    $region9: #{tpu_custom_call.1} parent=1 // pred_fallthru
      _
    // Predicated region
    $region10: #{tpu_custom_call.1} parent=1 // pred_check
      _
    $region11: #{tpu_custom_call.1} parent=1 // pred_check_branch
      %47 = sbr.rel (0) target = $region13
    $region12: #{tpu_custom_call.1} parent=1 // pred_region
      %48 = dma.done [#allocation4], 256
    $region13: #{tpu_custom_call.1} parent=1 // pred_fallthru
      _
    // Predicated region
    $region14: #{tpu_custom_call.1} parent=1 // pred_check
      _
    $region15: #{tpu_custom_call.1} parent=1 // pred_check_branch
      %50 = sbr.rel (0) target = $region17
    $region16: #{tpu_custom_call.1} parent=1 // pred_region
      %51 = dma.done [#allocation7], 256
    $region17: #{tpu_custom_call.1} parent=1 // pred_fallthru
      _
    %s52 = sadd.s32 0, 0
    %p53 = scmp.lt.s32.totalorder %s52, 0
    %s54 = scalar_select %p53, %s52, 0
    %s55 = smul.u32 2, %s54
    %s56 = sadd.s32 0, 0
    %p57 = scmp.lt.s32.totalorder %s56, 0
    %s58 = scalar_select %p57, %s56, 0
    %s59 = smul.u32 2, %s58
    %p60 = scmp.eq.s32.totalorder 0, 0
    // Predicated region
    $region18: #{tpu_custom_call.1} parent=1 // pred_check
      %p61 = pneg %p60
    $region19: #{tpu_custom_call.1} parent=1 // pred_check_branch
      %63 = sbr.rel (%p61) target = $region21
    $region20: #{tpu_custom_call.1} parent=1 // pred_region
      %64 = vst [vmem:[#allocation2] sm:$0xff] 0.0
    $region21: #{tpu_custom_call.1} parent=1 // pred_fallthru
      _
    %v65 = vld [vmem:[#allocation6] sm:$0xff]
    %v66 = vld [vmem:[#allocation6 + $0x8] sm:$0xff]
    %v67 = vld [vmem:[#allocation3] sm:$0xff]
    %v68 = vld [vmem:[#allocation3 + $0x8] sm:$0xff]
    %v69 = vsub.f32 %v65, %v67
    %v70 = vsub.f32 %v66, %v68
    %v71 = vld [vmem:[#allocation2] sm:$0xff]
    %v72 = vadd.f32 %v69, %v70
    %v73 = vadd.f32 %v71, %v72
    %74 = vst [vmem:[#allocation2] sm:$0xff] %v73
    // Predicated region
    $region22: #{tpu_custom_call.1} parent=1 // pred_check
      %p75 = pneg %p60
    $region23: #{tpu_custom_call.1} parent=1 // pred_check_branch
      %77 = sbr.rel (%p75) target = $region25
    $region24: #{tpu_custom_call.1} parent=1 // pred_region
      %v78 = vld [vmem:[#allocation2] sm:$0xff]
      %79 = vst [vmem:[#allocation8] sm:$0xff] %v78
    $region25: #{tpu_custom_call.1} parent=1 // pred_fallthru
      _
    // Predicated region
    $region26: #{tpu_custom_call.1} parent=1 // pred_check
      _
    $region27: #{tpu_custom_call.1} parent=1 // pred_check_branch
      %81 = sbr.rel (0) target = $region29
    $region28: #{tpu_custom_call.1} parent=1 // pred_region
      %s83 = ssub.s32 128, 128
      %84 = vsyncadd [#allocation5], %s83
      %s86 = sshll.u32 [#allocation8], 4
      %s87 = int_to_ptr.vmem [resolvable:$true] %s86
      %89 = dma.vmem_to_hbm [thread:$0]  %s87, 128, %s2, [#allocation5]
    $region29: #{tpu_custom_call.1} parent=1 // pred_fallthru
      _
    // Predicated region
    $region30: #{tpu_custom_call.1} parent=1 // pred_check
      _
    $region31: #{tpu_custom_call.1} parent=1 // pred_check_branch
      %91 = sbr.rel (0) target = $region33
    $region32: #{tpu_custom_call.1} parent=1 // pred_region
      %92 = dma.done [#allocation5], 128
    $region33: #{tpu_custom_call.1} parent=1 // pred_fallthru
      _
    %93 = vsyncpa [#allocation4], 1
    %94 = vsyncpa [#allocation7], 1
    %95 = vsyncpa [#allocation5], 1

</llo_original>
